<compile_context>
chip_gen: v5e
topology: v5e:2x2
jax: 0.10.0
libtpu: 0.0.40
codegen_flags: <defaults>
</compile_context>

<pallas_src>
import functools

import jax
import jax.numpy as jnp
from jax.experimental import pallas as pl
from jax.experimental.pallas import tpu as pltpu


def _round_up(n, m):
    return ((n + m - 1) // m) * m


# ---------------------------------------------------------------------------
# Kernel
# ---------------------------------------------------------------------------
def mlp_kernel(x_ref, w1_ref, b1_ref, w2_ref, b2_ref, o_ref):
    # Cast x to bf16 *inside* the kernel: HBM streams the caller's dtype (no
    # extra wrapper pass over x) while the MXU runs its fast bf16 path.
    x = x_ref[...].astype(jnp.bfloat16)
    # Layer 1: bf16 x bf16 -> f32 accumulation; bias + ReLU in f32.
    h = jnp.dot(x, w1_ref[...], preferred_element_type=jnp.float32)
    h = jnp.maximum(h + b1_ref[...], 0.0)
    # Layer 2: activations back to bf16 so the second dot also stays bf16.
    y = jnp.dot(h.astype(jnp.bfloat16), w2_ref[...],
                preferred_element_type=jnp.float32)
    o_ref[...] = (y + b2_ref[...]).astype(o_ref.dtype)


# ---------------------------------------------------------------------------
# pallas_call builder (cached once per shape signature)
# ---------------------------------------------------------------------------
@functools.lru_cache(maxsize=None)
def _build_call(B, D_in, D_hid, D_out_p, tb):
    grid = (pl.cdiv(B, tb),)  # partial last tile: out-of-bounds writes are masked
    return pl.pallas_call(
        mlp_kernel,
        out_shape=jax.ShapeDtypeStruct((B, D_out_p), jnp.bfloat16),
        grid_spec=pltpu.PrefetchScalarGridSpec(
            num_scalar_prefetch=0,
            grid=grid,
            in_specs=[
                # x tile: last block dim equals the full 784 (no 784->896 pad).
                pl.BlockSpec((tb, D_in), lambda i: (i, 0)),
                # Grid-invariant weights/biases: constant index_map -> the
                # pipeliner fetches them once and keeps them VMEM-resident.
                pl.BlockSpec((D_in, D_hid), lambda i: (0, 0)),    # w1 (bf16)
                pl.BlockSpec((1, D_hid), lambda i: (0, 0)),       # b1 (f32)
                pl.BlockSpec((D_hid, D_out_p), lambda i: (0, 0)),  # w2 (bf16)
                pl.BlockSpec((1, D_out_p), lambda i: (0, 0)),      # b2 (f32)
            ],
            out_specs=pl.BlockSpec((tb, D_out_p), lambda i: (i, 0)),
        ),
        compiler_params=pltpu.CompilerParams(
            # Batch axis shards across the two TensorCores on v7x.
            dimension_semantics=("parallel",),
        ),
    )


def _pick_tb(B):
    """Batch tile: multiple of 16 (bf16 sublane), >= 8 grid steps at large B."""
    tb_max = 1024 if B >= 8192 else 512  # big tiles amortize ~0.35us/step, tiny VMEM
    tb = _round_up(max(1, pl.cdiv(B, 8)), 16)
    return max(16, min(tb_max, tb))


# ---------------------------------------------------------------------------
# Wrappers
# ---------------------------------------------------------------------------
def prepare_params(w1, b1, w2, b2):
    """One-time weight prep (do this OUTSIDE the hot loop).

    bf16-casts the weights and lane-dense pads the 10-wide output dim to 128.
    Layout is (in_features, out_features), i.e. already transposed vs PyTorch.
    Returns ((w1, b1, w2, b2) prepared, d_out).
    """
    D_in, D_hid = w1.shape
    D_out = w2.shape[-1]
    D_out_p = _round_up(D_out, 128)  # 10 -> 128: unmasked lane-dense stores
    w1_p = w1.astype(jnp.bfloat16)
    b1_p = jnp.asarray(b1, jnp.float32).reshape(1, D_hid)
    w2_p = jnp.pad(w2, ((0, 0), (0, D_out_p - D_out))).astype(jnp.bfloat16)
    b2_p = jnp.pad(jnp.asarray(b2, jnp.float32).reshape(1, D_out),
                   ((0, 0), (0, D_out_p - D_out)))
    return (w1_p, b1_p, w2_p, b2_p), D_out


@functools.partial(jax.jit, static_argnames=("d_out",))
def mlp_forward(x, params, d_out=10):
    """x: (B, 1, 28, 28) or (B, 784). Returns (B, d_out) float32 logits."""
    w1_p, b1_p, w2_p, b2_p = params
    D_in, D_hid = w1_p.shape
    D_out_p = w2_p.shape[1]
    x2 = x.reshape(-1, D_in)  # matches x.view(-1, 784)
    B = x2.shape[0]
    tb = _pick_tb(B)
    out_p = _build_call(B, D_in, D_hid, D_out_p, tb)(x2, w1_p, b1_p, w2_p, b2_p)
    # Tiny slice + cast of the lane-dense bf16 slab back to (B, d_out) f32.
    return out_p[:, :d_out].astype(jnp.float32)


def init_params(key):
    """Deterministic init mirroring nn.Linear(784,256) / nn.Linear(256,10)."""
    k1, k2, k3, k4 = jax.random.split(key, 4)
    bound1 = 1.0 / jnp.sqrt(784.0)
    bound2 = 1.0 / jnp.sqrt(256.0)
    w1 = jax.random.uniform(k1, (784, 256), jnp.float32, -bound1, bound1)
    b1 = jax.random.uniform(k2, (1, 256), jnp.float32, -bound1, bound1)
    w2 = jax.random.uniform(k3, (256, 10), jnp.float32, -bound2, bound2)
    b2 = jax.random.uniform(k4, (1, 10), jnp.float32, -bound2, bound2)
    return w1, b1, w2, b2


if __name__ == "__main__":
    key = jax.random.PRNGKey(0)
    k_x, k_p = jax.random.split(key)

    # Small MNIST-like input (B, 1, 28, 28); forward flattens to (B, 784).
    B = 32
    x_img = jax.random.normal(k_x, (B, 1, 28, 28), jnp.float32)

    w1, b1, w2, b2 = init_params(k_p)
    params, d_out = prepare_params(w1, b1, w2, b2)  # one-time bf16 cast + pad

    out = mlp_forward(x_img, params, d_out=d_out)
    out = jax.block_until_ready(out)

    # Pure-JAX f32 reference; bf16 MXU operands -> ~1e-2-level tolerance.
    x = x_img.reshape(-1, 28 * 28)
    ref = jnp.maximum(x @ w1 + b1, 0.0) @ w2 + b2
    assert out.shape == (B, 10)
    assert jnp.allclose(out, ref, atol=3e-2, rtol=3e-2), float(
        jnp.max(jnp.abs(out - ref)))

    print("KERNEL_OK")
</pallas_src>

<mosaic_0001>
module attributes {stable_mosaic.version = 11 : i64} {
  func.func @mlp_kernel(%arg0: i32, %arg1: memref<16x784xf32, #tpu.memory_space<vmem>>, %arg2: memref<784x256xbf16, #tpu.memory_space<vmem>>, %arg3: memref<1x256xf32, #tpu.memory_space<vmem>>, %arg4: memref<256x128xbf16, #tpu.memory_space<vmem>>, %arg5: memref<1x128xf32, #tpu.memory_space<vmem>>, %arg6: memref<16x128xbf16, #tpu.memory_space<vmem>>) attributes {dimension_semantics = [#tpu.dimension_semantics<parallel>], iteration_bounds = array<i64: 2>, scalar_prefetch = 0 : i64, scratch_operands = 0 : i64, tpu.core_type = #tpu.core_type<tc>, window_params = [{transform_indices = @transform_0, window_bounds = array<i64: 16, 784>}, {pipeline_mode = #tpu.pipeline_mode<synchronous>, transform_indices = @transform_1, window_bounds = array<i64: 784, 256>}, {pipeline_mode = #tpu.pipeline_mode<synchronous>, transform_indices = @transform_2, window_bounds = array<i64: 1, 256>}, {pipeline_mode = #tpu.pipeline_mode<synchronous>, transform_indices = @transform_3, window_bounds = array<i64: 256, 128>}, {pipeline_mode = #tpu.pipeline_mode<synchronous>, transform_indices = @transform_4, window_bounds = array<i64: 1, 128>}, {transform_indices = @transform_5, window_bounds = array<i64: 16, 128>}]} {
    %c0 = arith.constant 0 : index
    %c0_0 = arith.constant 0 : index
    %0 = vector.load %arg1[%c0, %c0_0] : memref<16x784xf32, #tpu.memory_space<vmem>>, vector<16x784xf32>
    %1 = arith.truncf %0 : vector<16x784xf32> to vector<16x784xbf16>
    %c0_1 = arith.constant 0 : index
    %c0_2 = arith.constant 0 : index
    %2 = vector.load %arg2[%c0_1, %c0_2] : memref<784x256xbf16, #tpu.memory_space<vmem>>, vector<784x256xbf16>
    %cst = arith.constant dense<0.000000e+00> : vector<16x256xf32>
    %3 = tpu.matmul %1, %2, %cst {dimension_numbers = #tpu.dot_dimension_numbers<[1], [0], [0], [1], [0, 0, 1, 1], [], []>} : vector<16x784xbf16>, vector<784x256xbf16>, vector<16x256xf32> -> vector<16x256xf32>
    %c0_3 = arith.constant 0 : index
    %c0_4 = arith.constant 0 : index
    %4 = vector.load %arg3[%c0_3, %c0_4] : memref<1x256xf32, #tpu.memory_space<vmem>>, vector<1x256xf32>
    %5 = vector.broadcast %4 : vector<1x256xf32> to vector<16x256xf32>
    %6 = arith.addf %3, %5 : vector<16x256xf32>
    %cst_5 = arith.constant 0.000000e+00 : f32
    %7 = vector.broadcast %cst_5 : f32 to vector<16x256xf32>
    %8 = arith.maximumf %6, %7 : vector<16x256xf32>
    %9 = arith.truncf %8 : vector<16x256xf32> to vector<16x256xbf16>
    %c0_6 = arith.constant 0 : index
    %c0_7 = arith.constant 0 : index
    %10 = vector.load %arg4[%c0_6, %c0_7] : memref<256x128xbf16, #tpu.memory_space<vmem>>, vector<256x128xbf16>
    %cst_8 = arith.constant dense<0.000000e+00> : vector<16x128xf32>
    %11 = tpu.matmul %9, %10, %cst_8 {dimension_numbers = #tpu.dot_dimension_numbers<[1], [0], [0], [1], [0, 0, 1, 1], [], []>} : vector<16x256xbf16>, vector<256x128xbf16>, vector<16x128xf32> -> vector<16x128xf32>
    %c0_9 = arith.constant 0 : index
    %c0_10 = arith.constant 0 : index
    %12 = vector.load %arg5[%c0_9, %c0_10] : memref<1x128xf32, #tpu.memory_space<vmem>>, vector<1x128xf32>
    %13 = vector.broadcast %12 : vector<1x128xf32> to vector<16x128xf32>
    %14 = arith.addf %11, %13 : vector<16x128xf32>
    %15 = arith.truncf %14 : vector<16x128xf32> to vector<16x128xbf16>
    %c0_11 = arith.constant 0 : index
    %c0_12 = arith.constant 0 : index
    %16 = vector.load %arg6[%c0_11, %c0_12] : memref<16x128xbf16, #tpu.memory_space<vmem>>, vector<16x128xbf16>
    tpu.vector_store %arg6[%c0_11, %c0_12], %15 {strides = array<i32>} : memref<16x128xbf16, #tpu.memory_space<vmem>>, vector<16x128xbf16>,
    return
  }
  func.func @transform_0(%arg0: i32) -> (i32, i32) {
    %c0_i32 = arith.constant 0 : i32
    %c0_i32_0 = arith.constant 0 : i32
    return %arg0, %c0_i32 : i32, i32
  }
  func.func @transform_1(%arg0: i32) -> (i32, i32) {
    %c0_i32 = arith.constant 0 : i32
    %c0_i32_0 = arith.constant 0 : i32
    %c0_i32_1 = arith.constant 0 : i32
    return %c0_i32, %c0_i32_0 : i32, i32
  }
  func.func @transform_2(%arg0: i32) -> (i32, i32) {
    %c0_i32 = arith.constant 0 : i32
    %c0_i32_0 = arith.constant 0 : i32
    %c0_i32_1 = arith.constant 0 : i32
    return %c0_i32, %c0_i32_0 : i32, i32
  }
  func.func @transform_3(%arg0: i32) -> (i32, i32) {
    %c0_i32 = arith.constant 0 : i32
    %c0_i32_0 = arith.constant 0 : i32
    %c0_i32_1 = arith.constant 0 : i32
    return %c0_i32, %c0_i32_0 : i32, i32
  }
  func.func @transform_4(%arg0: i32) -> (i32, i32) {
    %c0_i32 = arith.constant 0 : i32
    %c0_i32_0 = arith.constant 0 : i32
    %c0_i32_1 = arith.constant 0 : i32
    return %c0_i32, %c0_i32_0 : i32, i32
  }
  func.func @transform_5(%arg0: i32) -> (i32, i32) {
    %c0_i32 = arith.constant 0 : i32
    %c0_i32_0 = arith.constant 0 : i32
    return %arg0, %c0_i32 : i32, i32
  }
}

</mosaic_0001>

<llo_original>
// kernel: mlp_forward.1
$region0: #{mlp_forward.1}
  #allocation0 [shape = 'u32[]', space=smem, size = 0x4, offset = 0x4, fixed_abs, tag = 'smem constant byte address 0x4 - core index']
  #allocation1 [shape = 'u32[72,128]{1,0:T(1,128)}', space=vmem, size = 0x9000, scoped, tag = 'internal scratch']
  %s0 = inlined_call_operand.vmem [shape: f32[32,784], index: 0, kind: input, shape index: {}]
  %s1 = inlined_call_operand.vmem [shape: bf16[784,256], index: 1, kind: input, shape index: {}]
  %s2 = inlined_call_operand.vmem [shape: f32[1,256], index: 2, kind: input, shape index: {}]
  %s3 = inlined_call_operand.vmem [shape: bf16[256,128], index: 3, kind: input, shape index: {}]
  %s4 = inlined_call_operand.vmem [shape: f32[1,128], index: 4, kind: input, shape index: {}]
  %s5 = inlined_call_operand.vmem [shape: bf16[32,128], index: 5, kind: output, shape index: {}]
  %s6 = sld [smem:[#allocation0]]
  $region53: #{mlp_forward.1} parent=0
    _
  %s8 = ssub.s32 1, %s6
  %s9 = scalar_select 0, %s8, %s6
  loop: start=0, step=1, limit=4
  $region2: #{mlp_forward.1} parent=0 // loop_pre_header
    _
  $region3: #{mlp_forward.1} parent=0 // loop_header
    %s11 = sphi 0, %s15
    %p12 = scmp.ge.s32.totalorder %s11, 4
    %s21 = sphi 0, %s23
    %s24 = sphi 0, %s21
    %s25 = sphi 0, %s24
    %s41 = sphi 0, %s25
    %s45 = sphi 0, %s45
    %s47 = sphi 0, %s45
    %s48 = sphi 0, %s47
    %s62 = sphi 0, %s48
    %s66 = sphi 0, %s66
    %s68 = sphi 0, %s66
    %s69 = sphi 0, %s68
    %s83 = sphi 0, %s69
    %s87 = sphi 0, %s87
    %s89 = sphi 0, %s87
    %s90 = sphi 0, %s89
    %s104 = sphi 0, %s90
    %s108 = sphi 0, %s108
    %s110 = sphi 0, %s108
    %s111 = sphi 0, %s110
    %s125 = sphi 0, %s111
    %s131 = sphi 0, %s133
    %s134 = sphi 0, %s131
    %s135 = sphi 0, %s134
    %s151 = sphi 0, %s135
  $region4: #{mlp_forward.1} parent=0 // loop_header_branch
    %14 = sbr.rel (%p12) target = $region8
  $region5: #{mlp_forward.1} parent=0 // loop_body
    %s16 = ssub.s32 %s11, 1
    %s17 = ssub.s32 %s11, 2
    %s18 = sadd.s32 %s11, 1
    %s19 = ssub.s32 %s11, %s18
    %p20 = scmp.eq.s32.totalorder %s19, 0
    %s22 = sadd.s32 %s21, 1
    %s23 = scalar_select %p20, %s21, %s22
    %p26 = pneg %p20
    %p27 = scmp.eq.s32.totalorder %s11, 1
    %p28 = por %p26, %p27
    %p29 = scmp.ne.s32.totalorder %s21, %s24
    %p30 = scmp.eq.s32.totalorder %s11, 0
    %p31 = por %p29, %p30
    %p32 = scmp.ne.s32.totalorder %s21, %s24
    %p33 = scmp.eq.s32.totalorder %s16, 1
    %p34 = por %p32, %p33
    %p35 = scmp.ne.s32.totalorder %s24, %s25
    %p36 = scmp.eq.s32.totalorder %s16, 0
    %p37 = por %p35, %p36
    %p38 = scmp.ne.s32.totalorder %s24, %s25
    %p39 = scmp.eq.s32.totalorder %s17, 1
    %p40 = por %p38, %p39
    %p42 = scmp.ne.s32.totalorder %s25, %s41
    %p43 = scmp.eq.s32.totalorder %s17, 0
    %p44 = por %p42, %p43
    %s46 = sadd.s32 %s45, 1
    %p49 = scmp.eq.s32.totalorder %s11, 1
    %p50 = scmp.ne.s32.totalorder %s45, %s47
    %p51 = scmp.eq.s32.totalorder %s11, 0
    %p52 = por %p50, %p51
    %p53 = scmp.ne.s32.totalorder %s45, %s47
    %p54 = scmp.eq.s32.totalorder %s16, 1
    %p55 = por %p53, %p54
    %p56 = scmp.ne.s32.totalorder %s47, %s48
    %p57 = scmp.eq.s32.totalorder %s16, 0
    %p58 = por %p56, %p57
    %p59 = scmp.ne.s32.totalorder %s47, %s48
    %p60 = scmp.eq.s32.totalorder %s17, 1
    %p61 = por %p59, %p60
    %p63 = scmp.ne.s32.totalorder %s48, %s62
    %p64 = scmp.eq.s32.totalorder %s17, 0
    %p65 = por %p63, %p64
    %s67 = sadd.s32 %s66, 1
    %p70 = scmp.eq.s32.totalorder %s11, 1
    %p71 = scmp.ne.s32.totalorder %s66, %s68
    %p72 = scmp.eq.s32.totalorder %s11, 0
    %p73 = por %p71, %p72
    %p74 = scmp.ne.s32.totalorder %s66, %s68
    %p75 = scmp.eq.s32.totalorder %s16, 1
    %p76 = por %p74, %p75
    %p77 = scmp.ne.s32.totalorder %s68, %s69
    %p78 = scmp.eq.s32.totalorder %s16, 0
    %p79 = por %p77, %p78
    %p80 = scmp.ne.s32.totalorder %s68, %s69
    %p81 = scmp.eq.s32.totalorder %s17, 1
    %p82 = por %p80, %p81
    %p84 = scmp.ne.s32.totalorder %s69, %s83
    %p85 = scmp.eq.s32.totalorder %s17, 0
    %p86 = por %p84, %p85
    %s88 = sadd.s32 %s87, 1
    %p91 = scmp.eq.s32.totalorder %s11, 1
    %p92 = scmp.ne.s32.totalorder %s87, %s89
    %p93 = scmp.eq.s32.totalorder %s11, 0
    %p94 = por %p92, %p93
    %p95 = scmp.ne.s32.totalorder %s87, %s89
    %p96 = scmp.eq.s32.totalorder %s16, 1
    %p97 = por %p95, %p96
    %p98 = scmp.ne.s32.totalorder %s89, %s90
    %p99 = scmp.eq.s32.totalorder %s16, 0
    %p100 = por %p98, %p99
    %p101 = scmp.ne.s32.totalorder %s89, %s90
    %p102 = scmp.eq.s32.totalorder %s17, 1
    %p103 = por %p101, %p102
    %p105 = scmp.ne.s32.totalorder %s90, %s104
    %p106 = scmp.eq.s32.totalorder %s17, 0
    %p107 = por %p105, %p106
    %s109 = sadd.s32 %s108, 1
    %p112 = scmp.eq.s32.totalorder %s11, 1
    %p113 = scmp.ne.s32.totalorder %s108, %s110
    %p114 = scmp.eq.s32.totalorder %s11, 0
    %p115 = por %p113, %p114
    %p116 = scmp.ne.s32.totalorder %s108, %s110
    %p117 = scmp.eq.s32.totalorder %s16, 1
    %p118 = por %p116, %p117
    %p119 = scmp.ne.s32.totalorder %s110, %s111
    %p120 = scmp.eq.s32.totalorder %s16, 0
    %p121 = por %p119, %p120
    %p122 = scmp.ne.s32.totalorder %s110, %s111
    %p123 = scmp.eq.s32.totalorder %s17, 1
    %p124 = por %p122, %p123
    %p126 = scmp.ne.s32.totalorder %s111, %s125
    %p127 = scmp.eq.s32.totalorder %s17, 0
    %p128 = por %p126, %p127
    %s129 = ssub.s32 %s11, %s18
    %p130 = scmp.eq.s32.totalorder %s129, 0
    %s132 = sadd.s32 %s131, 1
    %s133 = scalar_select %p130, %s131, %s132
    %p136 = pneg %p130
    %p137 = scmp.eq.s32.totalorder %s11, 1
    %p138 = por %p136, %p137
    %p139 = scmp.ne.s32.totalorder %s131, %s134
    %p140 = scmp.eq.s32.totalorder %s11, 0
    %p141 = por %p139, %p140
    %p142 = scmp.ne.s32.totalorder %s131, %s134
    %p143 = scmp.eq.s32.totalorder %s16, 1
    %p144 = por %p142, %p143
    %p145 = scmp.ne.s32.totalorder %s134, %s135
    %p146 = scmp.eq.s32.totalorder %s16, 0
    %p147 = por %p145, %p146
    %p148 = scmp.ne.s32.totalorder %s134, %s135
    %p149 = scmp.eq.s32.totalorder %s17, 1
    %p150 = por %p148, %p149
    %p152 = scmp.ne.s32.totalorder %s135, %s151
    %p153 = scmp.eq.s32.totalorder %s17, 0
    %p154 = por %p152, %p153
    %p155 = scmp.le.s32.totalorder 1, %s11
    %p156 = scmp.lt.s32.totalorder %s11, 3
    %p157 = pnand %p155, %p156
    %p158 = pneg %p157
    // Predicated region
    $region9: #{mlp_forward.1} parent=5 // pred_check
      _
    $region10: #{mlp_forward.1} parent=5 // pred_check_branch
      %160 = sbr.rel (%p157) target = $region12
    $region11: #{mlp_forward.1} parent=5 // pred_region
      %s161 = ssub.s32 %s11, 1
      // Predicated region
      $region13: #{mlp_forward.1} parent=11 // pred_check
        %p162 = pneg %p58
      $region14: #{mlp_forward.1} parent=11 // pred_check_branch
        %164 = sbr.rel (%p162) target = $region16
      $region15: #{mlp_forward.1} parent=11 // pred_region
        _
      $region16: #{mlp_forward.1} parent=11 // pred_fallthru
        _
      // Predicated region
      $region17: #{mlp_forward.1} parent=11 // pred_check
        %p165 = pneg %p79
      $region18: #{mlp_forward.1} parent=11 // pred_check_branch
        %167 = sbr.rel (%p165) target = $region20
      $region19: #{mlp_forward.1} parent=11 // pred_region
        _
      $region20: #{mlp_forward.1} parent=11 // pred_fallthru
        _
      // Predicated region
      $region21: #{mlp_forward.1} parent=11 // pred_check
        %p168 = pneg %p100
      $region22: #{mlp_forward.1} parent=11 // pred_check_branch
        %170 = sbr.rel (%p168) target = $region24
      $region23: #{mlp_forward.1} parent=11 // pred_region
        _
      $region24: #{mlp_forward.1} parent=11 // pred_fallthru
        _
      // Predicated region
      $region25: #{mlp_forward.1} parent=11 // pred_check
        %p171 = pneg %p121
      $region26: #{mlp_forward.1} parent=11 // pred_check_branch
        %173 = sbr.rel (%p171) target = $region28
      $region27: #{mlp_forward.1} parent=11 // pred_region
        _
      $region28: #{mlp_forward.1} parent=11 // pred_fallthru
        _
    $region12: #{mlp_forward.1} parent=5 // pred_fallthru
      _
    %p174 = scmp.lt.s32.totalorder %s11, 2
    // Predicated region
    $region29: #{mlp_forward.1} parent=5 // pred_check
      %p175 = pneg %p174
    $region30: #{mlp_forward.1} parent=5 // pred_check_branch
      %177 = sbr.rel (%p175) target = $region32
    $region31: #{mlp_forward.1} parent=5 // pred_region
      // Predicated region
      $region33: #{mlp_forward.1} parent=31 // pred_check
        %p178 = pneg %p31
      $region34: #{mlp_forward.1} parent=31 // pred_check_branch
        %180 = sbr.rel (%p178) target = $region36
      $region35: #{mlp_forward.1} parent=31 // pred_region
        %s181 = smul.u32 2, %s11
        %p182 = scmp.lt.s32.totalorder %s181, 3
        %s183 = scalar_select %p182, %s181, 3
        %s184 = smul.addr %s183, 7
        %s185 = smul.addr %s184, 8
        %s186 = scalar_lea.vmem %s0, %s185
        %s187 = smul.u32 2, %s11
      $region36: #{mlp_forward.1} parent=31 // pred_fallthru
        _
    $region32: #{mlp_forward.1} parent=5 // pred_fallthru
      _
    %p188 = scmp.le.s32.totalorder 1, %s11
    %p189 = scmp.lt.s32.totalorder %s11, 3
    %p190 = pnand %p188, %p189
    %p191 = pneg %p190
    // Predicated region
    $region37: #{mlp_forward.1} parent=5 // pred_check
      _
    $region38: #{mlp_forward.1} parent=5 // pred_check_branch
      %193 = sbr.rel (%p190) target = $region40
    $region39: #{mlp_forward.1} parent=5 // pred_region
      %s194 = ssub.s32 %s11, 1
      %s195 = smul.u32 2, %s16
      %p196 = scmp.lt.s32.totalorder %s195, 3
      %s197 = scalar_select %p196, %s195, 3
      %s198 = smul.addr %s197, 7
      %s199 = smul.addr %s198, 8
      %s200 = scalar_lea.vmem %s0, %s199
      %p201 = pneg %p37
      %p202 = pneg %p34
      %p203 = pneg %p58
      %p204 = pneg %p55
      %p205 = pneg %p79
      %p206 = pneg %p76
      %p207 = pneg %p100
      %p208 = pneg %p97
      %p209 = pneg %p121
      %p210 = pneg %p118
      %p211 = pneg %p147
      %p212 = pneg %p144
      %s213 = smul.u32 2, %s16
      %p214 = scmp.lt.s32.totalorder %s213, 3
      %s215 = scalar_select %p214, %s213, 3
      %s216 = smul.addr %s215, 4
      %s217 = scalar_lea.vmem %s5, %s216
      %s218 = smul.u32 2, %s16
      %p219 = scmp.lt.s32.totalorder %s218, 3
      %s220 = scalar_select %p219, %s218, 3
      %s221 = smul.addr %s220, 7
      %s222 = smul.addr %s221, 8
      %s223 = scalar_lea.vmem %s0, %s222
      %s224 = smul.u32 2, %s16
      %s225 = smul.u32 2, %s16
      %p226 = scmp.lt.s32.totalorder %s225, 3
      %s227 = scalar_select %p226, %s225, 3
      %s228 = smul.addr %s227, 4
      %s229 = scalar_lea.vmem %s5, %s228
      %s230 = smul.u32 2, %s16
      %v232 = vld [vmem:[%s223] sm:$0xff]
      %v233 = vld [vmem:[%s223 + $0x8] sm:$0xff]
      %v234 = vld [vmem:[%s223 + $0x10] sm:$0xff]
      %v235 = vld [vmem:[%s223 + $0x18] sm:$0xff]
      %v236 = vld [vmem:[%s223 + $0x20] sm:$0xff]
      %v237 = vld [vmem:[%s223 + $0x28] sm:$0xff]
      %v238 = vld [vmem:[%s223 + $0x30] sm:$0xff]
      %v239 = vld [vmem:[%s223 + $0x38] sm:$0xff]
      %v240 = vld [vmem:[%s223 + $0x40] sm:$0xff]
      %v241 = vld [vmem:[%s223 + $0x48] sm:$0xff]
      %v242 = vld [vmem:[%s223 + $0x50] sm:$0xff]
      %v243 = vld [vmem:[%s223 + $0x58] sm:$0xff]
      %v244 = vld [vmem:[%s223 + $0x60] sm:$0xff]
      %v245 = vld [vmem:[%s223 + $0x68] sm:$0xff]
      %v246 = vpack.c.bf16 %v239, %v232
      %v247 = vpack.c.bf16 %v240, %v233
      %v248 = vpack.c.bf16 %v241, %v234
      %v249 = vpack.c.bf16 %v242, %v235
      %v250 = vpack.c.bf16 %v243, %v236
      %v251 = vpack.c.bf16 %v244, %v237
      %v252 = vpack.c.bf16 %v245, %v238
      %v253 = vld [vmem:[%s1] sm:$0xff]
      %v254 = vld [vmem:[%s1 + $0x8] sm:$0xff]
      %v255 = vld [vmem:[%s1 + $0x10] sm:$0xff]
      %v256 = vld [vmem:[%s1 + $0x18] sm:$0xff]
      %v257 = vld [vmem:[%s1 + $0x20] sm:$0xff]
      %v258 = vld [vmem:[%s1 + $0x28] sm:$0xff]
      %v259 = vld [vmem:[%s1 + $0x30] sm:$0xff]
      %v260 = vld [vmem:[%s1 + $0x38] sm:$0xff]
      %v261 = vld [vmem:[%s1 + $0x40] sm:$0xff]
      %v262 = vld [vmem:[%s1 + $0x48] sm:$0xff]
      %v263 = vld [vmem:[%s1 + $0x50] sm:$0xff]
      %v264 = vld [vmem:[%s1 + $0x58] sm:$0xff]
      %v265 = vld [vmem:[%s1 + $0x60] sm:$0xff]
      %v266 = vld [vmem:[%s1 + $0x68] sm:$0xff]
      %v267 = vld [vmem:[%s1 + $0x70] sm:$0xff]
      %v268 = vld [vmem:[%s1 + $0x78] sm:$0xff]
      %v269 = vld [vmem:[%s1 + $0x80] sm:$0xff]
      %v270 = vld [vmem:[%s1 + $0x88] sm:$0xff]
      %v271 = vld [vmem:[%s1 + $0x90] sm:$0xff]
      %v272 = vld [vmem:[%s1 + $0x98] sm:$0xff]
      %v273 = vld [vmem:[%s1 + $0xa0] sm:$0xff]
      %v274 = vld [vmem:[%s1 + $0xa8] sm:$0xff]
      %v275 = vld [vmem:[%s1 + $0xb0] sm:$0xff]
      %v276 = vld [vmem:[%s1 + $0xb8] sm:$0xff]
      %v277 = vld [vmem:[%s1 + $0xc0] sm:$0xff]
      %v278 = vld [vmem:[%s1 + $0xc8] sm:$0xff]
      %v279 = vld [vmem:[%s1 + $0xd0] sm:$0xff]
      %v280 = vld [vmem:[%s1 + $0xd8] sm:$0xff]
      %v281 = vld [vmem:[%s1 + $0xe0] sm:$0xff]
      %v282 = vld [vmem:[%s1 + $0xe8] sm:$0xff]
      %v283 = vld [vmem:[%s1 + $0xf0] sm:$0xff]
      %v284 = vld [vmem:[%s1 + $0xf8] sm:$0xff]
      %v285 = vld [vmem:[%s1 + $0x100] sm:$0xff]
      %v286 = vld [vmem:[%s1 + $0x108] sm:$0xff]
      %v287 = vld [vmem:[%s1 + $0x110] sm:$0xff]
      %v288 = vld [vmem:[%s1 + $0x118] sm:$0xff]
      %v289 = vld [vmem:[%s1 + $0x120] sm:$0xff]
      %v290 = vld [vmem:[%s1 + $0x128] sm:$0xff]
      %v291 = vld [vmem:[%s1 + $0x130] sm:$0xff]
      %v292 = vld [vmem:[%s1 + $0x138] sm:$0xff]
      %v293 = vld [vmem:[%s1 + $0x140] sm:$0xff]
      %v294 = vld [vmem:[%s1 + $0x148] sm:$0xff]
      %v295 = vld [vmem:[%s1 + $0x150] sm:$0xff]
      %v296 = vld [vmem:[%s1 + $0x158] sm:$0xff]
      %v297 = vld [vmem:[%s1 + $0x160] sm:$0xff]
      %v298 = vld [vmem:[%s1 + $0x168] sm:$0xff]
      %v299 = vld [vmem:[%s1 + $0x170] sm:$0xff]
      %v300 = vld [vmem:[%s1 + $0x178] sm:$0xff]
      %v301 = vld [vmem:[%s1 + $0x180] sm:$0xff]
      %v302 = vld [vmem:[%s1 + $0x188] sm:$0xff]
      %v303 = vld [vmem:[%s1 + $0x190] sm:$0xff]
      %v304 = vld [vmem:[%s1 + $0x198] sm:$0xff]
      %v305 = vld [vmem:[%s1 + $0x1a0] sm:$0xff]
      %v306 = vld [vmem:[%s1 + $0x1a8] sm:$0xff]
      %v307 = vld [vmem:[%s1 + $0x1b0] sm:$0xff]
      %v308 = vld [vmem:[%s1 + $0x1b8] sm:$0xff]
      %v309 = vld [vmem:[%s1 + $0x1c0] sm:$0xff]
      %v310 = vld [vmem:[%s1 + $0x1c8] sm:$0xff]
      %v311 = vld [vmem:[%s1 + $0x1d0] sm:$0xff]
      %v312 = vld [vmem:[%s1 + $0x1d8] sm:$0xff]
      %v313 = vld [vmem:[%s1 + $0x1e0] sm:$0xff]
      %v314 = vld [vmem:[%s1 + $0x1e8] sm:$0xff]
      %v315 = vld [vmem:[%s1 + $0x1f0] sm:$0xff]
      %v316 = vld [vmem:[%s1 + $0x1f8] sm:$0xff]
      %v317 = vld [vmem:[%s1 + $0x200] sm:$0xff]
      %v318 = vld [vmem:[%s1 + $0x208] sm:$0xff]
      %v319 = vld [vmem:[%s1 + $0x210] sm:$0xff]
      %v320 = vld [vmem:[%s1 + $0x218] sm:$0xff]
      %v321 = vld [vmem:[%s1 + $0x220] sm:$0xff]
      %v322 = vld [vmem:[%s1 + $0x228] sm:$0xff]
      %v323 = vld [vmem:[%s1 + $0x230] sm:$0xff]
      %v324 = vld [vmem:[%s1 + $0x238] sm:$0xff]
      %v325 = vld [vmem:[%s1 + $0x240] sm:$0xff]
      %v326 = vld [vmem:[%s1 + $0x248] sm:$0xff]
      %v327 = vld [vmem:[%s1 + $0x250] sm:$0xff]
      %v328 = vld [vmem:[%s1 + $0x258] sm:$0xff]
      %v329 = vld [vmem:[%s1 + $0x260] sm:$0xff]
      %v330 = vld [vmem:[%s1 + $0x268] sm:$0xff]
      %v331 = vld [vmem:[%s1 + $0x270] sm:$0xff]
      %v332 = vld [vmem:[%s1 + $0x278] sm:$0xff]
      %v333 = vld [vmem:[%s1 + $0x280] sm:$0xff]
      %v334 = vld [vmem:[%s1 + $0x288] sm:$0xff]
      %v335 = vld [vmem:[%s1 + $0x290] sm:$0xff]
      %v336 = vld [vmem:[%s1 + $0x298] sm:$0xff]
      %v337 = vld [vmem:[%s1 + $0x2a0] sm:$0xff]
      %v338 = vld [vmem:[%s1 + $0x2a8] sm:$0xff]
      %v339 = vld [vmem:[%s1 + $0x2b0] sm:$0xff]
      %v340 = vld [vmem:[%s1 + $0x2b8] sm:$0xff]
      %v341 = vld [vmem:[%s1 + $0x2c0] sm:$0xff]
      %v342 = vld [vmem:[%s1 + $0x2c8] sm:$0xff]
      %v343 = vld [vmem:[%s1 + $0x2d0] sm:$0xff]
      %v344 = vld [vmem:[%s1 + $0x2d8] sm:$0xff]
      %v345 = vld [vmem:[%s1 + $0x2e0] sm:$0xff]
      %v346 = vld [vmem:[%s1 + $0x2e8] sm:$0xff]
      %v347 = vld [vmem:[%s1 + $0x2f0] sm:$0xff]
      %v348 = vld [vmem:[%s1 + $0x2f8] sm:$0xff]
      %v349 = vld [vmem:[%s1 + $0x300] sm:$0xff]
      %v350 = vld [vmem:[%s1 + $0x308] sm:$0xff]
      %v351 = vld [vmem:[%s2] sm:$0x3]
      %v353 = vperm.slane %v351, 0
      %v354 = vperm.slane %v351, 1
      %v455 = vunpack.c.l.b16 %v253
      %v456 = vunpack.c.h.b16 %v253
      %v457 = vunpack.c.l.b16 %v254
      %v458 = vunpack.c.h.b16 %v254
      %v459 = vunpack.c.l.b16 %v255
      %v460 = vunpack.c.h.b16 %v255
      %v461 = vunpack.c.l.b16 %v256
      %v462 = vunpack.c.h.b16 %v256
      %v463 = vunpack.c.l.b16 %v257
      %v464 = vunpack.c.h.b16 %v257
      %v465 = vunpack.c.l.b16 %v258
      %v466 = vunpack.c.h.b16 %v258
      %v467 = vunpack.c.l.b16 %v259
      %v468 = vunpack.c.h.b16 %v259
      %v469 = vunpack.c.l.b16 %v260
      %v470 = vunpack.c.h.b16 %v260
      %v471 = vunpack.c.l.b16 %v261
      %v472 = vunpack.c.h.b16 %v261
      %v473 = vunpack.c.l.b16 %v262
      %v474 = vunpack.c.h.b16 %v262
      %v475 = vunpack.c.l.b16 %v263
      %v476 = vunpack.c.h.b16 %v263
      %v477 = vunpack.c.l.b16 %v264
      %v478 = vunpack.c.h.b16 %v264
      %v479 = vunpack.c.l.b16 %v265
      %v480 = vunpack.c.h.b16 %v265
      %v481 = vunpack.c.l.b16 %v266
      %v482 = vunpack.c.h.b16 %v266
      %v483 = vunpack.c.l.b16 %v267
      %v484 = vunpack.c.h.b16 %v267
      %v485 = vunpack.c.l.b16 %v268
      %v486 = vunpack.c.h.b16 %v268
      %v487 = vunpack.c.l.b16 %v269
      %v488 = vunpack.c.h.b16 %v269
      %v489 = vunpack.c.l.b16 %v270
      %v490 = vunpack.c.h.b16 %v270
      %v491 = vunpack.c.l.b16 %v271
      %v492 = vunpack.c.h.b16 %v271
      %v493 = vunpack.c.l.b16 %v272
      %v494 = vunpack.c.h.b16 %v272
      %v495 = vunpack.c.l.b16 %v273
      %v496 = vunpack.c.h.b16 %v273
      %v497 = vunpack.c.l.b16 %v274
      %v498 = vunpack.c.h.b16 %v274
      %v499 = vunpack.c.l.b16 %v275
      %v500 = vunpack.c.h.b16 %v275
      %v501 = vunpack.c.l.b16 %v276
      %v502 = vunpack.c.h.b16 %v276
      %v503 = vunpack.c.l.b16 %v277
      %v504 = vunpack.c.h.b16 %v277
      %v505 = vunpack.c.l.b16 %v278
      %v506 = vunpack.c.h.b16 %v278
      %v507 = vunpack.c.l.b16 %v279
      %v508 = vunpack.c.h.b16 %v279
      %v509 = vunpack.c.l.b16 %v280
      %v510 = vunpack.c.h.b16 %v280
      %v511 = vunpack.c.l.b16 %v281
      %v512 = vunpack.c.h.b16 %v281
      %v513 = vunpack.c.l.b16 %v282
      %v514 = vunpack.c.h.b16 %v282
      %v515 = vunpack.c.l.b16 %v283
      %v516 = vunpack.c.h.b16 %v283
      %v517 = vunpack.c.l.b16 %v284
      %v518 = vunpack.c.h.b16 %v284
      %v519 = vunpack.c.l.b16 %v285
      %v520 = vunpack.c.h.b16 %v285
      %v521 = vunpack.c.l.b16 %v286
      %v522 = vunpack.c.h.b16 %v286
      %v523 = vunpack.c.l.b16 %v287
      %v524 = vunpack.c.h.b16 %v287
      %v525 = vunpack.c.l.b16 %v288
      %v526 = vunpack.c.h.b16 %v288
      %v527 = vunpack.c.l.b16 %v289
      %v528 = vunpack.c.h.b16 %v289
      %v529 = vunpack.c.l.b16 %v290
      %v530 = vunpack.c.h.b16 %v290
      %v531 = vunpack.c.l.b16 %v291
      %v532 = vunpack.c.h.b16 %v291
      %v533 = vunpack.c.l.b16 %v292
      %v534 = vunpack.c.h.b16 %v292
      %v535 = vunpack.c.l.b16 %v293
      %v536 = vunpack.c.h.b16 %v293
      %v537 = vunpack.c.l.b16 %v294
      %v538 = vunpack.c.h.b16 %v294
      %v539 = vunpack.c.l.b16 %v295
      %v540 = vunpack.c.h.b16 %v295
      %v541 = vunpack.c.l.b16 %v296
      %v542 = vunpack.c.h.b16 %v296
      %v543 = vunpack.c.l.b16 %v297
      %v544 = vunpack.c.h.b16 %v297
      %v545 = vunpack.c.l.b16 %v298
      %v546 = vunpack.c.h.b16 %v298
      %v547 = vunpack.c.l.b16 %v299
      %v548 = vunpack.c.h.b16 %v299
      %v549 = vunpack.c.l.b16 %v300
      %v550 = vunpack.c.h.b16 %v300
      %v551 = vunpack.c.l.b16 %v301
      %v552 = vunpack.c.h.b16 %v301
      %v553 = vunpack.c.l.b16 %v302
      %v554 = vunpack.c.h.b16 %v302
      %v555 = vunpack.c.l.b16 %v303
      %v556 = vunpack.c.h.b16 %v303
      %v557 = vunpack.c.l.b16 %v304
      %v558 = vunpack.c.h.b16 %v304
      %v559 = vunpack.c.l.b16 %v305
      %v560 = vunpack.c.h.b16 %v305
      %v561 = vunpack.c.l.b16 %v306
      %v562 = vunpack.c.h.b16 %v306
      %v563 = vunpack.c.l.b16 %v307
      %v564 = vunpack.c.h.b16 %v307
      %v565 = vunpack.c.l.b16 %v308
      %v566 = vunpack.c.h.b16 %v308
      %v567 = vunpack.c.l.b16 %v309
      %v568 = vunpack.c.h.b16 %v309
      %v569 = vunpack.c.l.b16 %v310
      %v570 = vunpack.c.h.b16 %v310
      %v571 = vunpack.c.l.b16 %v311
      %v572 = vunpack.c.h.b16 %v311
      %v573 = vunpack.c.l.b16 %v312
      %v574 = vunpack.c.h.b16 %v312
      %v575 = vunpack.c.l.b16 %v313
      %v576 = vunpack.c.h.b16 %v313
      %v577 = vunpack.c.l.b16 %v314
      %v578 = vunpack.c.h.b16 %v314
      %v579 = vunpack.c.l.b16 %v315
      %v580 = vunpack.c.h.b16 %v315
      %v581 = vunpack.c.l.b16 %v316
      %v582 = vunpack.c.h.b16 %v316
      %v583 = vunpack.c.l.b16 %v317
      %v584 = vunpack.c.h.b16 %v317
      %v585 = vunpack.c.l.b16 %v318
      %v586 = vunpack.c.h.b16 %v318
      %v587 = vunpack.c.l.b16 %v319
      %v588 = vunpack.c.h.b16 %v319
      %v589 = vunpack.c.l.b16 %v320
      %v590 = vunpack.c.h.b16 %v320
      %v591 = vunpack.c.l.b16 %v321
      %v592 = vunpack.c.h.b16 %v321
      %v593 = vunpack.c.l.b16 %v322
      %v594 = vunpack.c.h.b16 %v322
      %v595 = vunpack.c.l.b16 %v323
      %v596 = vunpack.c.h.b16 %v323
      %v597 = vunpack.c.l.b16 %v324
      %v598 = vunpack.c.h.b16 %v324
      %v599 = vunpack.c.l.b16 %v325
      %v600 = vunpack.c.h.b16 %v325
      %v601 = vunpack.c.l.b16 %v326
      %v602 = vunpack.c.h.b16 %v326
      %v603 = vunpack.c.l.b16 %v327
      %v604 = vunpack.c.h.b16 %v327
      %v605 = vunpack.c.l.b16 %v328
      %v606 = vunpack.c.h.b16 %v328
      %v607 = vunpack.c.l.b16 %v329
      %v608 = vunpack.c.h.b16 %v329
      %v609 = vunpack.c.l.b16 %v330
      %v610 = vunpack.c.h.b16 %v330
      %v611 = vunpack.c.l.b16 %v331
      %v612 = vunpack.c.h.b16 %v331
      %v613 = vunpack.c.l.b16 %v332
      %v614 = vunpack.c.h.b16 %v332
      %v615 = vunpack.c.l.b16 %v333
      %v616 = vunpack.c.h.b16 %v333
      %v617 = vunpack.c.l.b16 %v334
      %v618 = vunpack.c.h.b16 %v334
      %v619 = vunpack.c.l.b16 %v335
      %v620 = vunpack.c.h.b16 %v335
      %v621 = vunpack.c.l.b16 %v336
      %v622 = vunpack.c.h.b16 %v336
      %v623 = vunpack.c.l.b16 %v337
      %v624 = vunpack.c.h.b16 %v337
      %v625 = vunpack.c.l.b16 %v338
      %v626 = vunpack.c.h.b16 %v338
      %v627 = vunpack.c.l.b16 %v339
      %v628 = vunpack.c.h.b16 %v339
      %v629 = vunpack.c.l.b16 %v340
      %v630 = vunpack.c.h.b16 %v340
      %v631 = vunpack.c.l.b16 %v341
      %v632 = vunpack.c.h.b16 %v341
      %v633 = vunpack.c.l.b16 %v342
      %v634 = vunpack.c.h.b16 %v342
      %v635 = vunpack.c.l.b16 %v343
      %v636 = vunpack.c.h.b16 %v343
      %v637 = vunpack.c.l.b16 %v344
      %v638 = vunpack.c.h.b16 %v344
      %v639 = vunpack.c.l.b16 %v345
      %v640 = vunpack.c.h.b16 %v345
      %v641 = vunpack.c.l.b16 %v346
      %v642 = vunpack.c.h.b16 %v346
      %v643 = vunpack.c.l.b16 %v347
      %v644 = vunpack.c.h.b16 %v347
      %v645 = vunpack.c.l.b16 %v348
      %v646 = vunpack.c.h.b16 %v348
      %v647 = vunpack.c.l.b16 %v349
      %v648 = vunpack.c.h.b16 %v349
      %v649 = vunpack.c.l.b16 %v350
      %v650 = vunpack.c.h.b16 %v350
      %v651 = vpack.c.b16 %v457, %v455
      %v652 = vpack.c.b16 %v458, %v456
      %v653 = vpack.c.b16 %v461, %v459
      %v654 = vpack.c.b16 %v462, %v460
      %v655 = vpack.c.b16 %v465, %v463
      %v656 = vpack.c.b16 %v466, %v464
      %v657 = vpack.c.b16 %v469, %v467
      %v658 = vpack.c.b16 %v470, %v468
      %v659 = vpack.c.b16 %v473, %v471
      %v660 = vpack.c.b16 %v474, %v472
      %v661 = vpack.c.b16 %v477, %v475
      %v662 = vpack.c.b16 %v478, %v476
      %v663 = vpack.c.b16 %v481, %v479
      %v664 = vpack.c.b16 %v482, %v480
      %v665 = vpack.c.b16 %v485, %v483
      %v666 = vpack.c.b16 %v486, %v484
      %v667 = vpack.c.b16 %v489, %v487
      %v668 = vpack.c.b16 %v490, %v488
      %v669 = vpack.c.b16 %v493, %v491
      %v670 = vpack.c.b16 %v494, %v492
      %v671 = vpack.c.b16 %v497, %v495
      %v672 = vpack.c.b16 %v498, %v496
      %v673 = vpack.c.b16 %v501, %v499
      %v674 = vpack.c.b16 %v502, %v500
      %v675 = vpack.c.b16 %v505, %v503
      %v676 = vpack.c.b16 %v506, %v504
      %v677 = vpack.c.b16 %v509, %v507
      %v678 = vpack.c.b16 %v510, %v508
      %v679 = vpack.c.b16 %v513, %v511
      %v680 = vpack.c.b16 %v514, %v512
      %v681 = vpack.c.b16 %v517, %v515
      %v682 = vpack.c.b16 %v518, %v516
      %v683 = vpack.c.b16 %v521, %v519
      %v684 = vpack.c.b16 %v522, %v520
      %v685 = vpack.c.b16 %v525, %v523
      %v686 = vpack.c.b16 %v526, %v524
      %v687 = vpack.c.b16 %v529, %v527
      %v688 = vpack.c.b16 %v530, %v528
      %v689 = vpack.c.b16 %v533, %v531
      %v690 = vpack.c.b16 %v534, %v532
      %v691 = vpack.c.b16 %v537, %v535
      %v692 = vpack.c.b16 %v538, %v536
      %v693 = vpack.c.b16 %v541, %v539
      %v694 = vpack.c.b16 %v542, %v540
      %v695 = vpack.c.b16 %v545, %v543
      %v696 = vpack.c.b16 %v546, %v544
      %v697 = vpack.c.b16 %v549, %v547
      %v698 = vpack.c.b16 %v550, %v548
      %v699 = vpack.c.b16 %v553, %v551
      %v700 = vpack.c.b16 %v554, %v552
      %v701 = vpack.c.b16 %v557, %v555
      %v702 = vpack.c.b16 %v558, %v556
      %v703 = vpack.c.b16 %v561, %v559
      %v704 = vpack.c.b16 %v562, %v560
      %v705 = vpack.c.b16 %v565, %v563
      %v706 = vpack.c.b16 %v566, %v564
      %v707 = vpack.c.b16 %v569, %v567
      %v708 = vpack.c.b16 %v570, %v568
      %v709 = vpack.c.b16 %v573, %v571
      %v710 = vpack.c.b16 %v574, %v572
      %v711 = vpack.c.b16 %v577, %v575
      %v712 = vpack.c.b16 %v578, %v576
      %v713 = vpack.c.b16 %v581, %v579
      %v714 = vpack.c.b16 %v582, %v580
      %v715 = vpack.c.b16 %v585, %v583
      %v716 = vpack.c.b16 %v586, %v584
      %v717 = vpack.c.b16 %v589, %v587
      %v718 = vpack.c.b16 %v590, %v588
      %v719 = vpack.c.b16 %v593, %v591
      %v720 = vpack.c.b16 %v594, %v592
      %v721 = vpack.c.b16 %v597, %v595
      %v722 = vpack.c.b16 %v598, %v596
      %v723 = vpack.c.b16 %v601, %v599
      %v724 = vpack.c.b16 %v602, %v600
      %v725 = vpack.c.b16 %v605, %v603
      %v726 = vpack.c.b16 %v606, %v604
      %v727 = vpack.c.b16 %v609, %v607
      %v728 = vpack.c.b16 %v610, %v608
      %v729 = vpack.c.b16 %v613, %v611
      %v730 = vpack.c.b16 %v614, %v612
      %v731 = vpack.c.b16 %v617, %v615
      %v732 = vpack.c.b16 %v618, %v616
      %v733 = vpack.c.b16 %v621, %v619
      %v734 = vpack.c.b16 %v622, %v620
      %v735 = vpack.c.b16 %v625, %v623
      %v736 = vpack.c.b16 %v626, %v624
      %v737 = vpack.c.b16 %v629, %v627
      %v738 = vpack.c.b16 %v630, %v628
      %v739 = vpack.c.b16 %v633, %v631
      %v740 = vpack.c.b16 %v634, %v632
      %v741 = vpack.c.b16 %v637, %v635
      %v742 = vpack.c.b16 %v638, %v636
      %v743 = vpack.c.b16 %v641, %v639
      %v744 = vpack.c.b16 %v642, %v640
      %v745 = vpack.c.b16 %v645, %v643
      %v746 = vpack.c.b16 %v646, %v644
      %v747 = vpack.c.b16 %v649, %v647
      %v748 = vpack.c.b16 %v650, %v648
      %vm847 = vcmask 130048
      %v849 = vsel %vm847, %v252, 0
      %851 = vmatpush.bf16.msra.mxu0 %v665
      %852 = vmatpush.bf16.msra.mxu0 %v663
      %853 = vmatpush.bf16.msra.mxu0 %v661
      %854 = vmatpush.bf16.msra.mxu0 %v659
      %855 = vmatpush.bf16.msra.mxu0 %v657
      %856 = vmatpush.bf16.msra.mxu0 %v655
      %857 = vmatpush.bf16.msra.mxu0 %v653
      %858 = vmatpush.bf16.msra.mxu0 %v651
      %859 = vmatmul.bf16.gmra.mxu0 %v246
      %v860 = vpop.f32.mrf.mxu0
      %v861 = vadd.f32 %v353, %v860
      %v862 = vpop.f32.mrf.mxu0
      %v863 = vadd.f32 %v353, %v862
      %864 = vdwg.mxu0
      %865 = vmatpush.bf16.msra.mxu0 %v681
      %866 = vmatpush.bf16.msra.mxu0 %v679
      %867 = vmatpush.bf16.msra.mxu0 %v677
      %868 = vmatpush.bf16.msra.mxu0 %v675
      %869 = vmatpush.bf16.msra.mxu0 %v673
      %870 = vmatpush.bf16.msra.mxu0 %v671
      %871 = vmatpush.bf16.msra.mxu0 %v669
      %872 = vmatpush.bf16.msra.mxu0 %v667
      %873 = vmatmul.bf16.gmra.mxu0 %v247
      %v874 = vpop.f32.mrf.mxu0
      %v875 = vadd.f32 %v861, %v874
      %v876 = vpop.f32.mrf.mxu0
      %v877 = vadd.f32 %v863, %v876
      %878 = vdwg.mxu0
      %879 = vmatpush.bf16.msra.mxu0 %v697
      %880 = vmatpush.bf16.msra.mxu0 %v695
      %881 = vmatpush.bf16.msra.mxu0 %v693
      %882 = vmatpush.bf16.msra.mxu0 %v691
      %883 = vmatpush.bf16.msra.mxu0 %v689
      %884 = vmatpush.bf16.msra.mxu0 %v687
      %885 = vmatpush.bf16.msra.mxu0 %v685
      %886 = vmatpush.bf16.msra.mxu0 %v683
      %887 = vmatmul.bf16.gmra.mxu0 %v248
      %v888 = vpop.f32.mrf.mxu0
      %v889 = vadd.f32 %v875, %v888
      %v890 = vpop.f32.mrf.mxu0
      %v891 = vadd.f32 %v877, %v890
      %892 = vdwg.mxu0
      %893 = vmatpush.bf16.msra.mxu0 %v713
      %894 = vmatpush.bf16.msra.mxu0 %v711
      %895 = vmatpush.bf16.msra.mxu0 %v709
      %896 = vmatpush.bf16.msra.mxu0 %v707
      %897 = vmatpush.bf16.msra.mxu0 %v705
      %898 = vmatpush.bf16.msra.mxu0 %v703
      %899 = vmatpush.bf16.msra.mxu0 %v701
      %900 = vmatpush.bf16.msra.mxu0 %v699
      %901 = vmatmul.bf16.gmra.mxu0 %v249
      %v902 = vpop.f32.mrf.mxu0
      %v903 = vadd.f32 %v889, %v902
      %v904 = vpop.f32.mrf.mxu0
      %v905 = vadd.f32 %v891, %v904
      %906 = vdwg.mxu0
      %907 = vmatpush.bf16.msra.mxu0 %v729
      %908 = vmatpush.bf16.msra.mxu0 %v727
      %909 = vmatpush.bf16.msra.mxu0 %v725
      %910 = vmatpush.bf16.msra.mxu0 %v723
      %911 = vmatpush.bf16.msra.mxu0 %v721
      %912 = vmatpush.bf16.msra.mxu0 %v719
      %913 = vmatpush.bf16.msra.mxu0 %v717
      %914 = vmatpush.bf16.msra.mxu0 %v715
      %915 = vmatmul.bf16.gmra.mxu0 %v250
      %v916 = vpop.f32.mrf.mxu0
      %v917 = vadd.f32 %v903, %v916
      %v918 = vpop.f32.mrf.mxu0
      %v919 = vadd.f32 %v905, %v918
      %920 = vdwg.mxu0
      %921 = vmatpush.bf16.msra.mxu0 %v745
      %922 = vmatpush.bf16.msra.mxu0 %v743
      %923 = vmatpush.bf16.msra.mxu0 %v741
      %924 = vmatpush.bf16.msra.mxu0 %v739
      %925 = vmatpush.bf16.msra.mxu0 %v737
      %926 = vmatpush.bf16.msra.mxu0 %v735
      %927 = vmatpush.bf16.msra.mxu0 %v733
      %928 = vmatpush.bf16.msra.mxu0 %v731
      %929 = vmatmul.bf16.gmra.mxu0 %v251
      %v930 = vpop.f32.mrf.mxu0
      %v931 = vadd.f32 %v917, %v930
      %v932 = vpop.f32.mrf.mxu0
      %v933 = vadd.f32 %v919, %v932
      %934 = vdwg.mxu0
      %935 = vmatpush.bf16.msra.mxu0 0
      %936 = vmatpush.bf16.msra.mxu0 0
      %937 = vmatpush.bf16.msra.mxu0 0
      %938 = vmatpush.bf16.msra.mxu0 0
      %939 = vmatpush.bf16.msra.mxu0 0
      %940 = vmatpush.bf16.msra.mxu0 0
      %941 = vmatpush.bf16.msra.mxu0 0
      %942 = vmatpush.bf16.msra.mxu0 %v747
      %943 = vmatmul.bf16.gmra.mxu0 %v849
      %v944 = vpop.f32.mrf.mxu0
      %v945 = vadd.f32 %v931, %v944
      %v946 = vpop.f32.mrf.mxu0
      %v947 = vadd.f32 %v933, %v946
      %948 = vdwg.mxu0
      %949 = vmatpush.bf16.msra.mxu0 %v666
      %950 = vmatpush.bf16.msra.mxu0 %v664
      %951 = vmatpush.bf16.msra.mxu0 %v662
      %952 = vmatpush.bf16.msra.mxu0 %v660
      %953 = vmatpush.bf16.msra.mxu0 %v658
      %954 = vmatpush.bf16.msra.mxu0 %v656
      %955 = vmatpush.bf16.msra.mxu0 %v654
      %956 = vmatpush.bf16.msra.mxu0 %v652
      %957 = vmatmul.bf16.gmra.mxu0 %v246
      %v958 = vpop.f32.mrf.mxu0
      %v959 = vadd.f32 %v354, %v958
      %v960 = vpop.f32.mrf.mxu0
      %v961 = vadd.f32 %v354, %v960
      %962 = vdwg.mxu0
      %963 = vmatpush.bf16.msra.mxu0 %v682
      %964 = vmatpush.bf16.msra.mxu0 %v680
      %965 = vmatpush.bf16.msra.mxu0 %v678
      %966 = vmatpush.bf16.msra.mxu0 %v676
      %967 = vmatpush.bf16.msra.mxu0 %v674
      %968 = vmatpush.bf16.msra.mxu0 %v672
      %969 = vmatpush.bf16.msra.mxu0 %v670
      %970 = vmatpush.bf16.msra.mxu0 %v668
      %971 = vmatmul.bf16.gmra.mxu0 %v247
      %v972 = vpop.f32.mrf.mxu0
      %v973 = vadd.f32 %v959, %v972
      %v974 = vpop.f32.mrf.mxu0
      %v975 = vadd.f32 %v961, %v974
      %976 = vdwg.mxu0
      %977 = vmatpush.bf16.msra.mxu0 %v698
      %978 = vmatpush.bf16.msra.mxu0 %v696
      %979 = vmatpush.bf16.msra.mxu0 %v694
      %980 = vmatpush.bf16.msra.mxu0 %v692
      %981 = vmatpush.bf16.msra.mxu0 %v690
      %982 = vmatpush.bf16.msra.mxu0 %v688
      %983 = vmatpush.bf16.msra.mxu0 %v686
      %984 = vmatpush.bf16.msra.mxu0 %v684
      %985 = vmatmul.bf16.gmra.mxu0 %v248
      %v986 = vpop.f32.mrf.mxu0
      %v987 = vadd.f32 %v973, %v986
      %v988 = vpop.f32.mrf.mxu0
      %v989 = vadd.f32 %v975, %v988
      %990 = vdwg.mxu0
      %991 = vmatpush.bf16.msra.mxu0 %v714
      %992 = vmatpush.bf16.msra.mxu0 %v712
      %993 = vmatpush.bf16.msra.mxu0 %v710
      %994 = vmatpush.bf16.msra.mxu0 %v708
      %995 = vmatpush.bf16.msra.mxu0 %v706
      %996 = vmatpush.bf16.msra.mxu0 %v704
      %997 = vmatpush.bf16.msra.mxu0 %v702
      %998 = vmatpush.bf16.msra.mxu0 %v700
      %999 = vmatmul.bf16.gmra.mxu0 %v249
      %v1000 = vpop.f32.mrf.mxu0
      %v1001 = vadd.f32 %v987, %v1000
      %v1002 = vpop.f32.mrf.mxu0
      %v1003 = vadd.f32 %v989, %v1002
      %1004 = vdwg.mxu0
      %1005 = vmatpush.bf16.msra.mxu0 %v730
      %1006 = vmatpush.bf16.msra.mxu0 %v728
      %1007 = vmatpush.bf16.msra.mxu0 %v726
      %1008 = vmatpush.bf16.msra.mxu0 %v724
      %1009 = vmatpush.bf16.msra.mxu0 %v722
      %1010 = vmatpush.bf16.msra.mxu0 %v720
      %1011 = vmatpush.bf16.msra.mxu0 %v718
      %1012 = vmatpush.bf16.msra.mxu0 %v716
      %1013 = vmatmul.bf16.gmra.mxu0 %v250
      %v1014 = vpop.f32.mrf.mxu0
      %v1015 = vadd.f32 %v1001, %v1014
      %v1016 = vpop.f32.mrf.mxu0
      %v1017 = vadd.f32 %v1003, %v1016
      %1018 = vdwg.mxu0
      %1019 = vmatpush.bf16.msra.mxu0 %v746
      %1020 = vmatpush.bf16.msra.mxu0 %v744
      %1021 = vmatpush.bf16.msra.mxu0 %v742
      %1022 = vmatpush.bf16.msra.mxu0 %v740
      %1023 = vmatpush.bf16.msra.mxu0 %v738
      %1024 = vmatpush.bf16.msra.mxu0 %v736
      %1025 = vmatpush.bf16.msra.mxu0 %v734
      %1026 = vmatpush.bf16.msra.mxu0 %v732
      %1027 = vmatmul.bf16.gmra.mxu0 %v251
      %v1028 = vpop.f32.mrf.mxu0
      %v1029 = vadd.f32 %v1015, %v1028
      %v1030 = vpop.f32.mrf.mxu0
      %v1031 = vadd.f32 %v1017, %v1030
      %1032 = vdwg.mxu0
      %1033 = vmatpush.bf16.msra.mxu0 0
      %1034 = vmatpush.bf16.msra.mxu0 0
      %1035 = vmatpush.bf16.msra.mxu0 0
      %1036 = vmatpush.bf16.msra.mxu0 0
      %1037 = vmatpush.bf16.msra.mxu0 0
      %1038 = vmatpush.bf16.msra.mxu0 0
      %1039 = vmatpush.bf16.msra.mxu0 0
      %1040 = vmatpush.bf16.msra.mxu0 %v748
      %1041 = vmatmul.bf16.gmra.mxu0 %v849
      %v1042 = vpop.f32.mrf.mxu0
      %v1043 = vadd.f32 %v1029, %v1042
      %v1044 = vpop.f32.mrf.mxu0
      %v1045 = vadd.f32 %v1031, %v1044
      %1046 = vdwg.mxu0
      %v1047 = vmax.f32 %v945, 0.0
      %v1048 = vmax.f32 %v1043, 0.0
      %v1049 = vmax.f32 %v947, 0.0
      %v1050 = vmax.f32 %v1045, 0.0
      %v1051 = vpack.c.bf16 %v1049, %v1047
      %v1052 = vpack.c.bf16 %v1050, %v1048
      %v1053 = vld [vmem:[%s3] sm:$0xf]
      %v1054 = vld [vmem:[%s3 + $0x4] sm:$0xf]
      %v1055 = vld [vmem:[%s3 + $0x8] sm:$0xf]
      %v1056 = vld [vmem:[%s3 + $0xc] sm:$0xf]
      %v1057 = vld [vmem:[%s3 + $0x10] sm:$0xf]
      %v1058 = vld [vmem:[%s3 + $0x14] sm:$0xf]
      %v1059 = vld [vmem:[%s3 + $0x18] sm:$0xf]
      %v1060 = vld [vmem:[%s3 + $0x1c] sm:$0xf]
      %v1061 = vld [vmem:[%s3 + $0x20] sm:$0xf]
      %v1062 = vld [vmem:[%s3 + $0x24] sm:$0xf]
      %v1063 = vld [vmem:[%s3 + $0x28] sm:$0xf]
      %v1064 = vld [vmem:[%s3 + $0x2c] sm:$0xf]
      %v1065 = vld [vmem:[%s3 + $0x30] sm:$0xf]
      %v1066 = vld [vmem:[%s3 + $0x34] sm:$0xf]
      %v1067 = vld [vmem:[%s3 + $0x38] sm:$0xf]
      %v1068 = vld [vmem:[%s3 + $0x3c] sm:$0xf]
      %v1069 = vld [vmem:[%s3 + $0x40] sm:$0xf]
      %v1070 = vld [vmem:[%s3 + $0x44] sm:$0xf]
      %v1071 = vld [vmem:[%s3 + $0x48] sm:$0xf]
      %v1072 = vld [vmem:[%s3 + $0x4c] sm:$0xf]
      %v1073 = vld [vmem:[%s3 + $0x50] sm:$0xf]
      %v1074 = vld [vmem:[%s3 + $0x54] sm:$0xf]
      %v1075 = vld [vmem:[%s3 + $0x58] sm:$0xf]
      %v1076 = vld [vmem:[%s3 + $0x5c] sm:$0xf]
      %v1077 = vld [vmem:[%s3 + $0x60] sm:$0xf]
      %v1078 = vld [vmem:[%s3 + $0x64] sm:$0xf]
      %v1079 = vld [vmem:[%s3 + $0x68] sm:$0xf]
      %v1080 = vld [vmem:[%s3 + $0x6c] sm:$0xf]
      %v1081 = vld [vmem:[%s3 + $0x70] sm:$0xf]
      %v1082 = vld [vmem:[%s3 + $0x74] sm:$0xf]
      %v1083 = vld [vmem:[%s3 + $0x78] sm:$0xf]
      %v1084 = vld [vmem:[%s3 + $0x7c] sm:$0xf]
      %v1085 = vld [vmem:[%s4] sm:$0x1]
      %v1087 = vperm.slane %v1085, 0
      %v1121 = vunpack.c.l.b16 %v1053
      %v1122 = vunpack.c.l.b16 %v1054
      %v1123 = vunpack.c.l.b16 %v1055
      %v1124 = vunpack.c.l.b16 %v1056
      %v1125 = vunpack.c.l.b16 %v1057
      %v1126 = vunpack.c.l.b16 %v1058
      %v1127 = vunpack.c.l.b16 %v1059
      %v1128 = vunpack.c.l.b16 %v1060
      %v1129 = vunpack.c.l.b16 %v1061
      %v1130 = vunpack.c.l.b16 %v1062
      %v1131 = vunpack.c.l.b16 %v1063
      %v1132 = vunpack.c.l.b16 %v1064
      %v1133 = vunpack.c.l.b16 %v1065
      %v1134 = vunpack.c.l.b16 %v1066
      %v1135 = vunpack.c.l.b16 %v1067
      %v1136 = vunpack.c.l.b16 %v1068
      %v1137 = vunpack.c.l.b16 %v1069
      %v1138 = vunpack.c.l.b16 %v1070
      %v1139 = vunpack.c.l.b16 %v1071
      %v1140 = vunpack.c.l.b16 %v1072
      %v1141 = vunpack.c.l.b16 %v1073
      %v1142 = vunpack.c.l.b16 %v1074
      %v1143 = vunpack.c.l.b16 %v1075
      %v1144 = vunpack.c.l.b16 %v1076
      %v1145 = vunpack.c.l.b16 %v1077
      %v1146 = vunpack.c.l.b16 %v1078
      %v1147 = vunpack.c.l.b16 %v1079
      %v1148 = vunpack.c.l.b16 %v1080
      %v1149 = vunpack.c.l.b16 %v1081
      %v1150 = vunpack.c.l.b16 %v1082
      %v1151 = vunpack.c.l.b16 %v1083
      %v1152 = vunpack.c.l.b16 %v1084
      %v1153 = vpack.c.b16 %v1122, %v1121
      %v1154 = vpack.c.b16 %v1124, %v1123
      %v1155 = vpack.c.b16 %v1126, %v1125
      %v1156 = vpack.c.b16 %v1128, %v1127
      %v1157 = vpack.c.b16 %v1130, %v1129
      %v1158 = vpack.c.b16 %v1132, %v1131
      %v1159 = vpack.c.b16 %v1134, %v1133
      %v1160 = vpack.c.b16 %v1136, %v1135
      %v1161 = vpack.c.b16 %v1138, %v1137
      %v1162 = vpack.c.b16 %v1140, %v1139
      %v1163 = vpack.c.b16 %v1142, %v1141
      %v1164 = vpack.c.b16 %v1144, %v1143
      %v1165 = vpack.c.b16 %v1146, %v1145
      %v1166 = vpack.c.b16 %v1148, %v1147
      %v1167 = vpack.c.b16 %v1150, %v1149
      %v1168 = vpack.c.b16 %v1152, %v1151
      %1185 = vmatpush.bf16.msra.mxu0 %v1160
      %1186 = vmatpush.bf16.msra.mxu0 %v1159
      %1187 = vmatpush.bf16.msra.mxu0 %v1158
      %1188 = vmatpush.bf16.msra.mxu0 %v1157
      %1189 = vmatpush.bf16.msra.mxu0 %v1156
      %1190 = vmatpush.bf16.msra.mxu0 %v1155
      %1191 = vmatpush.bf16.msra.mxu0 %v1154
      %1192 = vmatpush.bf16.msra.mxu0 %v1153
      %1193 = vmatmul.bf16.gmra.mxu0 %v1051
      %v1194 = vpop.f32.mrf.mxu0
      %v1195 = vadd.f32 %v1087, %v1194
      %v1196 = vpop.f32.mrf.mxu0
      %v1197 = vadd.f32 %v1087, %v1196
      %1198 = vdwg.mxu0
      %1199 = vmatpush.bf16.msra.mxu0 %v1168
      %1200 = vmatpush.bf16.msra.mxu0 %v1167
      %1201 = vmatpush.bf16.msra.mxu0 %v1166
      %1202 = vmatpush.bf16.msra.mxu0 %v1165
      %1203 = vmatpush.bf16.msra.mxu0 %v1164
      %1204 = vmatpush.bf16.msra.mxu0 %v1163
      %1205 = vmatpush.bf16.msra.mxu0 %v1162
      %1206 = vmatpush.bf16.msra.mxu0 %v1161
      %1207 = vmatmul.bf16.gmra.mxu0 %v1052
      %v1208 = vpop.f32.mrf.mxu0
      %v1209 = vadd.f32 %v1195, %v1208
      %v1210 = vpop.f32.mrf.mxu0
      %v1211 = vadd.f32 %v1197, %v1210
      %1212 = vdwg.mxu0
      %v1213 = vpack.c.bf16 %v1209, %v1209
      %v1214 = vpack.c.bf16 %v1211, %v1211
      %1215 = vst [vmem:[%s229] sm:$0xf] %v1213
      %1216 = vst [vmem:[%s229 + $0x4] sm:$0xf] %v1214
      %s1217 = smul.u32 2, %s16
      %p1218 = scmp.lt.s32.totalorder %s1217, 3
      %s1219 = scalar_select %p1218, %s1217, 3
      %s1220 = smul.addr %s1219, 4
      %s1221 = scalar_lea.vmem %s5, %s1220
      // Predicated region
      $region41: #{mlp_forward.1} parent=39 // pred_check
        %p1222 = pneg %p144
      $region42: #{mlp_forward.1} parent=39 // pred_check_branch
        %1224 = sbr.rel (%p1222) target = $region44
      $region43: #{mlp_forward.1} parent=39 // pred_region
        %s1225 = smul.u32 2, %s16
      $region44: #{mlp_forward.1} parent=39 // pred_fallthru
        _
    $region40: #{mlp_forward.1} parent=5 // pred_fallthru
      _
    %p1226 = scmp.le.s32.totalorder 2, %s11
    // Predicated region
    $region45: #{mlp_forward.1} parent=5 // pred_check
      %p1227 = pneg %p1226
    $region46: #{mlp_forward.1} parent=5 // pred_check_branch
      %1229 = sbr.rel (%p1227) target = $region48
    $region47: #{mlp_forward.1} parent=5 // pred_region
      %s1230 = ssub.s32 %s11, 2
      // Predicated region
      $region49: #{mlp_forward.1} parent=47 // pred_check
        %p1231 = pneg %p150
      $region50: #{mlp_forward.1} parent=47 // pred_check_branch
        %1233 = sbr.rel (%p1231) target = $region52
      $region51: #{mlp_forward.1} parent=47 // pred_region
        %s1234 = smul.u32 2, %s17
        %p1235 = scmp.lt.s32.totalorder %s1234, 3
        %s1236 = scalar_select %p1235, %s1234, 3
        %s1237 = smul.addr %s1236, 4
        %s1238 = scalar_lea.vmem %s5, %s1237
      $region52: #{mlp_forward.1} parent=47 // pred_fallthru
        _
    $region48: #{mlp_forward.1} parent=5 // pred_fallthru
      _
  $region6: #{mlp_forward.1} parent=0 // loop_footer
    %s15 = sadd.s32 1, %s11
  $region7: #{mlp_forward.1} parent=0 // loop_footer_branch
    %10 = sbr.rel target = $region3
  $region8: #{mlp_forward.1} parent=0 // loop_exit
    _

</llo_original>
